<compile_context>
chip_gen: v7x
topology: tpu7x:2x2x1
jax: 0.10.0
libtpu: 0.0.40
codegen_flags: <defaults>
</compile_context>

<pallas_src>
import functools

import jax
import jax.numpy as jnp
from jax.experimental import pallas as pl
from jax.experimental.pallas import tpu as pltpu


# ------------------------------ fused Pallas kernel -------------------------------- #

def _bottleneck_kernel(x_ref, w1_ref, b1_ref, wdw_ref, b2_ref, wpr_ref, b3_ref, o_ref,
                       *, g, m, Wo):
    """Fused expand -> depthwise(3x3, s=2) -> project(+bypass) for g images.

    x_ref  : (g, Cin, 4*m)   parity-packed input [ee | eo | oe | oo], each (Cin, m)
    w1_ref : (Cmid, Cin)     BN-folded expand weight (transposed)
    b1_ref : (Cmid, 1)
    wdw_ref: (Cmid, 9)       BN-folded depthwise taps, column k = di*3 + dj
    b2_ref : (Cmid, 1)
    wpr_ref: (Cout, Cmid+Cin)  stacked [w3 | w_bypass] (BN-folded, transposed)
    b3_ref : (Cout, 1)       combined project + bypass bias
    o_ref  : (g, Cout, m)    m = Ho*Wo, already NCHW-ordered
    """
    f32 = jnp.float32
    w1 = w1_ref[...]
    b1 = b1_ref[...]
    wdw = wdw_ref[...]
    b2 = b2_ref[...]
    wpr = wpr_ref[...]
    b3 = b3_ref[...]

    # Mask that zeroes output column 0 (used by taps that read column oj-1).
    lane = jax.lax.broadcasted_iota(jnp.int32, (1, m), 1)
    colmask = ((lane % Wo) != 0).astype(f32)                       # (1, m)

    def shift_col(p):    # plane[oi, oj-1], zero at oj == 0
        s = jnp.concatenate([jnp.zeros((p.shape[0], 1), f32), p[:, :-1]], axis=1)
        return s * colmask

    def shift_row(p):    # plane[oi-1, oj], zero at oi == 0
        return jnp.concatenate([jnp.zeros((p.shape[0], Wo), f32), p[:, :-Wo]], axis=1)

    def shift_rowcol(p):  # plane[oi-1, oj-1], zero at oi == 0 or oj == 0
        s = jnp.concatenate([jnp.zeros((p.shape[0], Wo + 1), f32),
                             p[:, :-(Wo + 1)]], axis=1)
        return s * colmask

    for i in range(g):                                             # g is small & static
        xcat = x_ref[i]                                            # (Cin, 4m)
        x_ee = xcat[:, 0:m]                                        # bypass input x[:, ::2, ::2]

        # -- 1x1 expand: all four parity planes in one lane-dense matmul + LeakyReLU --
        z = jnp.dot(w1, xcat, preferred_element_type=f32) + b1     # (Cmid, 4m)
        h = jnp.maximum(z, 0.01 * z)
        h_ee, h_eo = h[:, 0:m], h[:, m:2 * m]
        h_oe, h_oo = h[:, 2 * m:3 * m], h[:, 3 * m:4 * m]

        # -- 3x3 stride-2 depthwise: 9 unit-stride FMAs on the parity planes ----------
        # tap (di,dj) -> weight column di*3+dj; padded row 2oi+di / col 2oj+dj maps to:
        #   di=1 -> even-row plane @ oi ; di=0 -> odd-row plane @ oi-1 ; di=2 -> odd @ oi
        #   dj=1 -> even-col plane @ oj ; dj=0 -> odd-col plane @ oj-1 ; dj=2 -> odd @ oj
        acc = (wdw[:, 4:5] * h_ee                                  # (1,1)
               + wdw[:, 5:6] * h_eo                                # (1,2)
               + wdw[:, 3:4] * shift_col(h_eo)                     # (1,0)
               + wdw[:, 7:8] * h_oe                                # (2,1)
               + wdw[:, 1:2] * shift_row(h_oe)                     # (0,1)
               + wdw[:, 8:9] * h_oo                                # (2,2)
               + wdw[:, 6:7] * shift_col(h_oo)                     # (2,0)
               + wdw[:, 2:3] * shift_row(h_oo)                     # (0,2)
               + wdw[:, 0:1] * shift_rowcol(h_oo))                 # (0,0)
        z2 = acc + b2
        hdw = jnp.maximum(z2, 0.01 * z2)                           # (Cmid, m)

        # -- fused 1x1 project + 1x1 stride-2 bypass: one stacked matmul --------------
        y = jnp.dot(wpr, jnp.concatenate([hdw, x_ee], axis=0),
                    preferred_element_type=f32) + b3               # (Cout, m)
        o_ref[i] = y.astype(o_ref.dtype)


# --------------------------------- Pallas wrapper ----------------------------------- #

def bottleneck_forward(x_nchw, params, kernel_size=3, stride=2, images_per_step=None):
    N, Cin, H, W = x_nchw.shape
    assert kernel_size == 3 and stride == 2, "kernel is specialized to 3x3 / stride 2"
    assert H % 2 == 0 and W % 2 == 0, "even spatial dims required for the parity split"
    Ho, Wo = H // 2, W // 2
    m = Ho * Wo
    cmid = params["w1"].shape[1]
    cout = params["w3"].shape[1]

    # ---- fold BN (eval-mode) scales into the weights; only biases reach the kernel --
    s1, b1 = params["bn1"]
    s2, b2 = params["bn2"]
    s3, b3 = params["bn3"]
    sby, bby = params["bnby"]
    w1t = (params["w1"] * s1[None, :]).T.astype(jnp.float32)        # (Cmid, Cin)
    wdwt = (params["wdw"] * s2[None, :]).T.astype(jnp.float32)      # (Cmid, 9)
    w3t = (params["w3"] * s3[None, :]).T.astype(jnp.float32)        # (Cout, Cmid)
    wbyt = (params["wby"] * sby[None, :]).T.astype(jnp.float32)     # (Cout, Cin)
    wpr = jnp.concatenate([w3t, wbyt], axis=1)                      # (Cout, Cmid+Cin)
    b1c = b1.reshape(cmid, 1).astype(jnp.float32)
    b2c = b2.reshape(cmid, 1).astype(jnp.float32)
    b3c = (b3 + bby).reshape(cout, 1).astype(jnp.float32)

    # ---- parity-pack the input once (the cheapest tensor, Cin-deep): ---------------
    #      replaces every strided / masked access inside the kernel.
    xf = x_nchw.astype(jnp.float32)
    planes = [xf[:, :, p::2, q::2].reshape(N, Cin, m)
              for (p, q) in ((0, 0), (0, 1), (1, 0), (1, 1))]
    x_packed = jnp.concatenate(planes, axis=2)                      # (N, Cin, H*W)

    # ---- images per grid step: enough lane-dense rows per step, overhead amortized --
    if images_per_step is None:
        g = 1
        while g < N and N % (2 * g) == 0 and g * H * W < 512:
            g *= 2
    else:
        g = images_per_step
    assert N % g == 0

    kernel = functools.partial(_bottleneck_kernel, g=g, m=m, Wo=Wo)

    out = pl.pallas_call(
        kernel,
        out_shape=jax.ShapeDtypeStruct((N, cout, m), jnp.float32),
        grid=(N // g,),
        in_specs=[
            pl.BlockSpec((g, Cin, 4 * m), lambda n: (n, 0, 0)),      # parity-packed x
            pl.BlockSpec((cmid, Cin), lambda n: (0, 0)),             # w1 * s1  (T)
            pl.BlockSpec((cmid, 1), lambda n: (0, 0)),               # b1
            pl.BlockSpec((cmid, 9), lambda n: (0, 0)),               # wdw * s2 (T)
            pl.BlockSpec((cmid, 1), lambda n: (0, 0)),               # b2
            pl.BlockSpec((cout, cmid + Cin), lambda n: (0, 0)),      # [w3 | w_bypass]
            pl.BlockSpec((cout, 1), lambda n: (0, 0)),               # b3 + b_bypass
        ],
        out_specs=pl.BlockSpec((g, cout, m), lambda n: (n, 0, 0)),
        compiler_params=pltpu.CompilerParams(
            dimension_semantics=("parallel",)),                      # v7x: 2 TCs
    )(x_packed, w1t, b1c, wdwt, b2c, wpr, b3c)

    # (N, Cout, Ho*Wo) -> (N, Cout, Ho, Wo): metadata-only, already NCHW.
    return out.reshape(N, cout, Ho, Wo)


# ---------------------------------- parameters -------------------------------------- #

def bn_fold(gamma, beta, mean, var, eps=1e-5):
    scale = gamma / jnp.sqrt(var + eps)
    bias = beta - mean * scale
    return scale, bias


def make_params(in_channels=4, out_channels=8, expansion_factor=6, kernel_size=3):
    cmid = in_channels * expansion_factor
    key = jax.random.PRNGKey(0)
    k1, k2, k3, k4 = jax.random.split(key, 4)

    def bn_params(c, off):
        gamma = 1.0 + 0.01 * (jnp.arange(c, dtype=jnp.float32) + off)
        beta = 0.02 * (jnp.arange(c, dtype=jnp.float32) - off)
        mean = 0.01 * jnp.arange(c, dtype=jnp.float32)
        var = 1.0 + 0.05 * (jnp.arange(c, dtype=jnp.float32) % 3)
        return bn_fold(gamma, beta, mean, var)

    return {
        # 1x1 expand conv, stored (Cin, Cmid)
        "w1": jax.random.normal(k1, (in_channels, cmid), jnp.float32) * 0.1,
        "bn1": bn_params(cmid, 0.0),
        # depthwise 3x3, stored (9, Cmid): tap index = di*3 + dj
        "wdw": jax.random.normal(k2, (kernel_size * kernel_size, cmid), jnp.float32) * 0.1,
        "bn2": bn_params(cmid, 1.0),
        # 1x1 project conv, (Cmid, Cout)
        "w3": jax.random.normal(k3, (cmid, out_channels), jnp.float32) * 0.1,
        "bn3": bn_params(out_channels, 2.0),
        # bypass 1x1 stride-2 conv, (Cin, Cout)
        "wby": jax.random.normal(k4, (in_channels, out_channels), jnp.float32) * 0.1,
        "bnby": bn_params(out_channels, 3.0),
    }


# -------------------------------- pure-JAX reference -------------------------------- #

def reference_forward(x_nchw, params, kernel_size=3, stride=2):
    def conv(x, w_oihw, s=1, pad=0, groups=1):
        return jax.lax.conv_general_dilated(
            x, w_oihw, (s, s), [(pad, pad), (pad, pad)],
            feature_group_count=groups,
            dimension_numbers=("NCHW", "OIHW", "NCHW"))

    def bn(x, scale, bias):
        return x * scale[None, :, None, None] + bias[None, :, None, None]

    def lrelu(x):
        return jnp.where(x > 0, x, 0.01 * x)

    cmid = params["w1"].shape[1]
    w1 = params["w1"].T[:, :, None, None]                             # (Cmid,Cin,1,1)
    wdw = params["wdw"].reshape(kernel_size, kernel_size, cmid)
    wdw = jnp.transpose(wdw, (2, 0, 1))[:, None, :, :]                # (Cmid,1,3,3)
    w3 = params["w3"].T[:, :, None, None]
    wby = params["wby"].T[:, :, None, None]

    h = lrelu(bn(conv(x_nchw, w1), *params["bn1"]))
    h = lrelu(bn(conv(h, wdw, s=stride, pad=(kernel_size - 1) // 2, groups=cmid),
                 *params["bn2"]))
    h = bn(conv(h, w3), *params["bn3"])
    byp = bn(conv(x_nchw, wby, s=stride), *params["bnby"])
    return h + byp


# -------------------------------------- main ----------------------------------------- #

if __name__ == "__main__":
    in_channels, out_channels = 4, 8
    N, H, W = 2, 16, 16

    params = make_params(in_channels, out_channels)
    x = jax.random.normal(jax.random.PRNGKey(0), (N, in_channels, H, W), jnp.float32)

    out = jax.block_until_ready(bottleneck_forward(x, params))

    ref = reference_forward(x, params)
    assert out.shape == ref.shape == (N, out_channels, H // 2, W // 2), out.shape
    assert jnp.allclose(out, ref, rtol=1e-3, atol=1e-3), "mismatch vs reference"

    print("KERNEL_OK")
</pallas_src>

<mosaic_0001>
module attributes {stable_mosaic.version = 11 : i64} {
  func.func @_bottleneck_kernel(%arg0: i32, %arg1: memref<2x4x256xf32, #tpu.memory_space<vmem>>, %arg2: memref<24x4xf32, #tpu.memory_space<vmem>>, %arg3: memref<24x1xf32, #tpu.memory_space<vmem>>, %arg4: memref<24x9xf32, #tpu.memory_space<vmem>>, %arg5: memref<24x1xf32, #tpu.memory_space<vmem>>, %arg6: memref<8x28xf32, #tpu.memory_space<vmem>>, %arg7: memref<8x1xf32, #tpu.memory_space<vmem>>, %arg8: memref<2x8x64xf32, #tpu.memory_space<vmem>>) attributes {dimension_semantics = [#tpu.dimension_semantics<parallel>], iteration_bounds = array<i64: 1>, scalar_prefetch = 0 : i64, scratch_operands = 0 : i64, tpu.core_type = #tpu.core_type<tc>, window_params = [{transform_indices = @transform_0, window_bounds = array<i64: 2, 4, 256>}, {pipeline_mode = #tpu.pipeline_mode<synchronous>, transform_indices = @transform_1, window_bounds = array<i64: 24, 4>}, {pipeline_mode = #tpu.pipeline_mode<synchronous>, transform_indices = @transform_2, window_bounds = array<i64: 24, 1>}, {pipeline_mode = #tpu.pipeline_mode<synchronous>, transform_indices = @transform_3, window_bounds = array<i64: 24, 9>}, {pipeline_mode = #tpu.pipeline_mode<synchronous>, transform_indices = @transform_4, window_bounds = array<i64: 24, 1>}, {pipeline_mode = #tpu.pipeline_mode<synchronous>, transform_indices = @transform_5, window_bounds = array<i64: 8, 28>}, {pipeline_mode = #tpu.pipeline_mode<synchronous>, transform_indices = @transform_6, window_bounds = array<i64: 8, 1>}, {transform_indices = @transform_7, window_bounds = array<i64: 2, 8, 64>}]} {
    %c0 = arith.constant 0 : index
    %c0_0 = arith.constant 0 : index
    %0 = vector.load %arg2[%c0, %c0_0] : memref<24x4xf32, #tpu.memory_space<vmem>>, vector<24x4xf32>
    %c0_1 = arith.constant 0 : index
    %c0_2 = arith.constant 0 : index
    %1 = vector.load %arg3[%c0_1, %c0_2] : memref<24x1xf32, #tpu.memory_space<vmem>>, vector<24x1xf32>
    %c0_3 = arith.constant 0 : index
    %c0_4 = arith.constant 0 : index
    %2 = vector.load %arg4[%c0_3, %c0_4] : memref<24x9xf32, #tpu.memory_space<vmem>>, vector<24x9xf32>
    %c0_5 = arith.constant 0 : index
    %c0_6 = arith.constant 0 : index
    %3 = vector.load %arg5[%c0_5, %c0_6] : memref<24x1xf32, #tpu.memory_space<vmem>>, vector<24x1xf32>
    %c0_7 = arith.constant 0 : index
    %c0_8 = arith.constant 0 : index
    %4 = vector.load %arg6[%c0_7, %c0_8] : memref<8x28xf32, #tpu.memory_space<vmem>>, vector<8x28xf32>
    %c0_9 = arith.constant 0 : index
    %c0_10 = arith.constant 0 : index
    %5 = vector.load %arg7[%c0_9, %c0_10] : memref<8x1xf32, #tpu.memory_space<vmem>>, vector<8x1xf32>
    %6 = tpu.iota {dimensions = array<i32: 1>} : vector<1x64xi32>
    %c8_i32 = arith.constant 8 : i32
    %c0_i32 = arith.constant 0 : i32
    %7 = arith.cmpi eq, %c8_i32, %c0_i32 : i32
    %c1_i32 = arith.constant 1 : i32
    %8 = arith.select %7, %c1_i32, %c8_i32 : i32
    %9 = vector.broadcast %8 : i32 to vector<1x64xi32>
    %10 = arith.remsi %6, %9 : vector<1x64xi32>
    %c0_i32_11 = arith.constant 0 : i32
    %11 = vector.broadcast %c0_i32_11 : i32 to vector<1x64xi32>
    %12 = arith.cmpi ne, %10, %11 : vector<1x64xi32>
    %c0_i32_12 = arith.constant 0 : i32
    %13 = vector.broadcast %c0_i32_12 : i32 to vector<1x64xi32>
    %14 = arith.cmpi slt, %10, %13 : vector<1x64xi32>
    %c0_i32_13 = arith.constant 0 : i32
    %15 = arith.cmpi slt, %8, %c0_i32_13 : i32
    %16 = vector.broadcast %15 : i1 to vector<1x64xi1>
    %17 = vector.broadcast %16 : vector<1x64xi1> to vector<1x64xi1>
    %18 = arith.xori %14, %17 : vector<1x64xi1>
    %19 = arith.andi %18, %12 : vector<1x64xi1>
    %20 = vector.broadcast %8 : i32 to vector<1x64xi32>
    %21 = arith.addi %10, %20 : vector<1x64xi32>
    %22 = arith.select %19, %21, %10 : vector<1x64xi1>, vector<1x64xi32>
    %c0_i32_14 = arith.constant 0 : i32
    %23 = vector.broadcast %c0_i32_14 : i32 to vector<1x64xi32>
    %24 = arith.cmpi ne, %22, %23 : vector<1x64xi32>
    %25 = arith.extui %24 : vector<1x64xi1> to vector<1x64xi32>
    %26 = arith.sitofp %25 : vector<1x64xi32> to vector<1x64xf32>
    %c0_15 = arith.constant 0 : index
    %c0_16 = arith.constant 0 : index
    %c0_17 = arith.constant 0 : index
    %27 = vector.load %arg1[%c0_15, %c0_16, %c0_17] : memref<2x4x256xf32, #tpu.memory_space<vmem>>, vector<1x4x256xf32>
    %28 = vector.shape_cast %27 : vector<1x4x256xf32> to vector<4x256xf32>
    %29 = vector.extract_strided_slice %28 {offsets = [0, 0], sizes = [4, 64], strides = [1, 1]} : vector<4x256xf32> to vector<4x64xf32>
    %cst = arith.constant dense<0.000000e+00> : vector<24x256xf32>
    %30 = tpu.matmul %0, %28, %cst {dimension_numbers = #tpu.dot_dimension_numbers<[1], [0], [0], [1], [0, 0, 1, 1], [], []>} : vector<24x4xf32>, vector<4x256xf32>, vector<24x256xf32> -> vector<24x256xf32>
    %31 = vector.broadcast %1 : vector<24x1xf32> to vector<24x256xf32>
    %32 = arith.addf %30, %31 : vector<24x256xf32>
    %cst_18 = arith.constant 0.00999999977 : f32
    %33 = vector.broadcast %cst_18 : f32 to vector<24x256xf32>
    %34 = arith.mulf %33, %32 : vector<24x256xf32>
    %35 = arith.maximumf %32, %34 : vector<24x256xf32>
    %36 = vector.extract_strided_slice %35 {offsets = [0, 0], sizes = [24, 64], strides = [1, 1]} : vector<24x256xf32> to vector<24x64xf32>
    %37 = vector.extract_strided_slice %35 {offsets = [0, 64], sizes = [24, 64], strides = [1, 1]} : vector<24x256xf32> to vector<24x64xf32>
    %38 = vector.extract_strided_slice %35 {offsets = [0, 128], sizes = [24, 64], strides = [1, 1]} : vector<24x256xf32> to vector<24x64xf32>
    %39 = vector.extract_strided_slice %35 {offsets = [0, 192], sizes = [24, 64], strides = [1, 1]} : vector<24x256xf32> to vector<24x64xf32>
    %40 = vector.extract_strided_slice %2 {offsets = [0, 4], sizes = [24, 1], strides = [1, 1]} : vector<24x9xf32> to vector<24x1xf32>
    %41 = vector.broadcast %40 : vector<24x1xf32> to vector<24x64xf32>
    %42 = arith.mulf %41, %36 : vector<24x64xf32>
    %43 = vector.extract_strided_slice %2 {offsets = [0, 5], sizes = [24, 1], strides = [1, 1]} : vector<24x9xf32> to vector<24x1xf32>
    %44 = vector.broadcast %43 : vector<24x1xf32> to vector<24x64xf32>
    %45 = arith.mulf %44, %37 : vector<24x64xf32>
    %46 = arith.addf %42, %45 : vector<24x64xf32>
    %47 = vector.extract_strided_slice %2 {offsets = [0, 3], sizes = [24, 1], strides = [1, 1]} : vector<24x9xf32> to vector<24x1xf32>
    %cst_19 = arith.constant 0.000000e+00 : f32
    %48 = vector.broadcast %cst_19 : f32 to vector<24x1xf32>
    %49 = vector.extract_strided_slice %37 {offsets = [0, 0], sizes = [24, 63], strides = [1, 1]} : vector<24x64xf32> to vector<24x63xf32>
    %50 = tpu.concatenate %48, %49 in 1 : vector<24x1xf32>, vector<24x63xf32> -> vector<24x64xf32>
    %51 = vector.broadcast %26 : vector<1x64xf32> to vector<24x64xf32>
    %52 = arith.mulf %50, %51 : vector<24x64xf32>
    %53 = vector.broadcast %47 : vector<24x1xf32> to vector<24x64xf32>
    %54 = arith.mulf %53, %52 : vector<24x64xf32>
    %55 = arith.addf %46, %54 : vector<24x64xf32>
    %56 = vector.extract_strided_slice %2 {offsets = [0, 7], sizes = [24, 1], strides = [1, 1]} : vector<24x9xf32> to vector<24x1xf32>
    %57 = vector.broadcast %56 : vector<24x1xf32> to vector<24x64xf32>
    %58 = arith.mulf %57, %38 : vector<24x64xf32>
    %59 = arith.addf %55, %58 : vector<24x64xf32>
    %60 = vector.extract_strided_slice %2 {offsets = [0, 1], sizes = [24, 1], strides = [1, 1]} : vector<24x9xf32> to vector<24x1xf32>
    %cst_20 = arith.constant 0.000000e+00 : f32
    %61 = vector.broadcast %cst_20 : f32 to vector<24x8xf32>
    %62 = vector.extract_strided_slice %38 {offsets = [0, 0], sizes = [24, 56], strides = [1, 1]} : vector<24x64xf32> to vector<24x56xf32>
    %63 = tpu.concatenate %61, %62 in 1 : vector<24x8xf32>, vector<24x56xf32> -> vector<24x64xf32>
    %64 = vector.broadcast %60 : vector<24x1xf32> to vector<24x64xf32>
    %65 = arith.mulf %64, %63 : vector<24x64xf32>
    %66 = arith.addf %59, %65 : vector<24x64xf32>
    %67 = vector.extract_strided_slice %2 {offsets = [0, 8], sizes = [24, 1], strides = [1, 1]} : vector<24x9xf32> to vector<24x1xf32>
    %68 = vector.broadcast %67 : vector<24x1xf32> to vector<24x64xf32>
    %69 = arith.mulf %68, %39 : vector<24x64xf32>
    %70 = arith.addf %66, %69 : vector<24x64xf32>
    %71 = vector.extract_strided_slice %2 {offsets = [0, 6], sizes = [24, 1], strides = [1, 1]} : vector<24x9xf32> to vector<24x1xf32>
    %cst_21 = arith.constant 0.000000e+00 : f32
    %72 = vector.broadcast %cst_21 : f32 to vector<24x1xf32>
    %73 = vector.extract_strided_slice %39 {offsets = [0, 0], sizes = [24, 63], strides = [1, 1]} : vector<24x64xf32> to vector<24x63xf32>
    %74 = tpu.concatenate %72, %73 in 1 : vector<24x1xf32>, vector<24x63xf32> -> vector<24x64xf32>
    %75 = vector.broadcast %26 : vector<1x64xf32> to vector<24x64xf32>
    %76 = arith.mulf %74, %75 : vector<24x64xf32>
    %77 = vector.broadcast %71 : vector<24x1xf32> to vector<24x64xf32>
    %78 = arith.mulf %77, %76 : vector<24x64xf32>
    %79 = arith.addf %70, %78 : vector<24x64xf32>
    %80 = vector.extract_strided_slice %2 {offsets = [0, 2], sizes = [24, 1], strides = [1, 1]} : vector<24x9xf32> to vector<24x1xf32>
    %cst_22 = arith.constant 0.000000e+00 : f32
    %81 = vector.broadcast %cst_22 : f32 to vector<24x8xf32>
    %82 = vector.extract_strided_slice %39 {offsets = [0, 0], sizes = [24, 56], strides = [1, 1]} : vector<24x64xf32> to vector<24x56xf32>
    %83 = tpu.concatenate %81, %82 in 1 : vector<24x8xf32>, vector<24x56xf32> -> vector<24x64xf32>
    %84 = vector.broadcast %80 : vector<24x1xf32> to vector<24x64xf32>
    %85 = arith.mulf %84, %83 : vector<24x64xf32>
    %86 = arith.addf %79, %85 : vector<24x64xf32>
    %87 = vector.extract_strided_slice %2 {offsets = [0, 0], sizes = [24, 1], strides = [1, 1]} : vector<24x9xf32> to vector<24x1xf32>
    %cst_23 = arith.constant 0.000000e+00 : f32
    %88 = vector.broadcast %cst_23 : f32 to vector<24x9xf32>
    %89 = vector.extract_strided_slice %39 {offsets = [0, 0], sizes = [24, 55], strides = [1, 1]} : vector<24x64xf32> to vector<24x55xf32>
    %90 = tpu.concatenate %88, %89 in 1 : vector<24x9xf32>, vector<24x55xf32> -> vector<24x64xf32>
    %91 = vector.broadcast %26 : vector<1x64xf32> to vector<24x64xf32>
    %92 = arith.mulf %90, %91 : vector<24x64xf32>
    %93 = vector.broadcast %87 : vector<24x1xf32> to vector<24x64xf32>
    %94 = arith.mulf %93, %92 : vector<24x64xf32>
    %95 = arith.addf %86, %94 : vector<24x64xf32>
    %96 = vector.broadcast %3 : vector<24x1xf32> to vector<24x64xf32>
    %97 = arith.addf %95, %96 : vector<24x64xf32>
    %cst_24 = arith.constant 0.00999999977 : f32
    %98 = vector.broadcast %cst_24 : f32 to vector<24x64xf32>
    %99 = arith.mulf %98, %97 : vector<24x64xf32>
    %100 = arith.maximumf %97, %99 : vector<24x64xf32>
    %101 = tpu.concatenate %100, %29 in 0 : vector<24x64xf32>, vector<4x64xf32> -> vector<28x64xf32>
    %cst_25 = arith.constant dense<0.000000e+00> : vector<8x64xf32>
    %102 = tpu.matmul %4, %101, %cst_25 {dimension_numbers = #tpu.dot_dimension_numbers<[1], [0], [0], [1], [0, 0, 1, 1], [], []>} : vector<8x28xf32>, vector<28x64xf32>, vector<8x64xf32> -> vector<8x64xf32>
    %103 = vector.broadcast %5 : vector<8x1xf32> to vector<8x64xf32>
    %104 = arith.addf %102, %103 : vector<8x64xf32>
    %c0_26 = arith.constant 0 : index
    %c0_27 = arith.constant 0 : index
    %c0_28 = arith.constant 0 : index
    %105 = vector.load %arg8[%c0_26, %c0_27, %c0_28] : memref<2x8x64xf32, #tpu.memory_space<vmem>>, vector<1x8x64xf32>
    %106 = vector.shape_cast %105 : vector<1x8x64xf32> to vector<8x64xf32>
    %107 = vector.shape_cast %104 : vector<8x64xf32> to vector<1x8x64xf32>
    tpu.vector_store %arg8[%c0_26, %c0_27, %c0_28], %107 {strides = array<i32>} : memref<2x8x64xf32, #tpu.memory_space<vmem>>, vector<1x8x64xf32>,
    %c1 = arith.constant 1 : index
    %c0_29 = arith.constant 0 : index
    %c0_30 = arith.constant 0 : index
    %108 = vector.load %arg1[%c1, %c0_29, %c0_30] : memref<2x4x256xf32, #tpu.memory_space<vmem>>, vector<1x4x256xf32>
    %109 = vector.shape_cast %108 : vector<1x4x256xf32> to vector<4x256xf32>
    %110 = vector.extract_strided_slice %109 {offsets = [0, 0], sizes = [4, 64], strides = [1, 1]} : vector<4x256xf32> to vector<4x64xf32>
    %cst_31 = arith.constant dense<0.000000e+00> : vector<24x256xf32>
    %111 = tpu.matmul %0, %109, %cst_31 {dimension_numbers = #tpu.dot_dimension_numbers<[1], [0], [0], [1], [0, 0, 1, 1], [], []>} : vector<24x4xf32>, vector<4x256xf32>, vector<24x256xf32> -> vector<24x256xf32>
    %112 = vector.broadcast %1 : vector<24x1xf32> to vector<24x256xf32>
    %113 = arith.addf %111, %112 : vector<24x256xf32>
    %cst_32 = arith.constant 0.00999999977 : f32
    %114 = vector.broadcast %cst_32 : f32 to vector<24x256xf32>
    %115 = arith.mulf %114, %113 : vector<24x256xf32>
    %116 = arith.maximumf %113, %115 : vector<24x256xf32>
    %117 = vector.extract_strided_slice %116 {offsets = [0, 0], sizes = [24, 64], strides = [1, 1]} : vector<24x256xf32> to vector<24x64xf32>
    %118 = vector.extract_strided_slice %116 {offsets = [0, 64], sizes = [24, 64], strides = [1, 1]} : vector<24x256xf32> to vector<24x64xf32>
    %119 = vector.extract_strided_slice %116 {offsets = [0, 128], sizes = [24, 64], strides = [1, 1]} : vector<24x256xf32> to vector<24x64xf32>
    %120 = vector.extract_strided_slice %116 {offsets = [0, 192], sizes = [24, 64], strides = [1, 1]} : vector<24x256xf32> to vector<24x64xf32>
    %121 = vector.extract_strided_slice %2 {offsets = [0, 4], sizes = [24, 1], strides = [1, 1]} : vector<24x9xf32> to vector<24x1xf32>
    %122 = vector.broadcast %121 : vector<24x1xf32> to vector<24x64xf32>
    %123 = arith.mulf %122, %117 : vector<24x64xf32>
    %124 = vector.extract_strided_slice %2 {offsets = [0, 5], sizes = [24, 1], strides = [1, 1]} : vector<24x9xf32> to vector<24x1xf32>
    %125 = vector.broadcast %124 : vector<24x1xf32> to vector<24x64xf32>
    %126 = arith.mulf %125, %118 : vector<24x64xf32>
    %127 = arith.addf %123, %126 : vector<24x64xf32>
    %128 = vector.extract_strided_slice %2 {offsets = [0, 3], sizes = [24, 1], strides = [1, 1]} : vector<24x9xf32> to vector<24x1xf32>
    %cst_33 = arith.constant 0.000000e+00 : f32
    %129 = vector.broadcast %cst_33 : f32 to vector<24x1xf32>
    %130 = vector.extract_strided_slice %118 {offsets = [0, 0], sizes = [24, 63], strides = [1, 1]} : vector<24x64xf32> to vector<24x63xf32>
    %131 = tpu.concatenate %129, %130 in 1 : vector<24x1xf32>, vector<24x63xf32> -> vector<24x64xf32>
    %132 = vector.broadcast %26 : vector<1x64xf32> to vector<24x64xf32>
    %133 = arith.mulf %131, %132 : vector<24x64xf32>
    %134 = vector.broadcast %128 : vector<24x1xf32> to vector<24x64xf32>
    %135 = arith.mulf %134, %133 : vector<24x64xf32>
    %136 = arith.addf %127, %135 : vector<24x64xf32>
    %137 = vector.extract_strided_slice %2 {offsets = [0, 7], sizes = [24, 1], strides = [1, 1]} : vector<24x9xf32> to vector<24x1xf32>
    %138 = vector.broadcast %137 : vector<24x1xf32> to vector<24x64xf32>
    %139 = arith.mulf %138, %119 : vector<24x64xf32>
    %140 = arith.addf %136, %139 : vector<24x64xf32>
    %141 = vector.extract_strided_slice %2 {offsets = [0, 1], sizes = [24, 1], strides = [1, 1]} : vector<24x9xf32> to vector<24x1xf32>
    %cst_34 = arith.constant 0.000000e+00 : f32
    %142 = vector.broadcast %cst_34 : f32 to vector<24x8xf32>
    %143 = vector.extract_strided_slice %119 {offsets = [0, 0], sizes = [24, 56], strides = [1, 1]} : vector<24x64xf32> to vector<24x56xf32>
    %144 = tpu.concatenate %142, %143 in 1 : vector<24x8xf32>, vector<24x56xf32> -> vector<24x64xf32>
    %145 = vector.broadcast %141 : vector<24x1xf32> to vector<24x64xf32>
    %146 = arith.mulf %145, %144 : vector<24x64xf32>
    %147 = arith.addf %140, %146 : vector<24x64xf32>
    %148 = vector.extract_strided_slice %2 {offsets = [0, 8], sizes = [24, 1], strides = [1, 1]} : vector<24x9xf32> to vector<24x1xf32>
    %149 = vector.broadcast %148 : vector<24x1xf32> to vector<24x64xf32>
    %150 = arith.mulf %149, %120 : vector<24x64xf32>
    %151 = arith.addf %147, %150 : vector<24x64xf32>
    %152 = vector.extract_strided_slice %2 {offsets = [0, 6], sizes = [24, 1], strides = [1, 1]} : vector<24x9xf32> to vector<24x1xf32>
    %cst_35 = arith.constant 0.000000e+00 : f32
    %153 = vector.broadcast %cst_35 : f32 to vector<24x1xf32>
    %154 = vector.extract_strided_slice %120 {offsets = [0, 0], sizes = [24, 63], strides = [1, 1]} : vector<24x64xf32> to vector<24x63xf32>
    %155 = tpu.concatenate %153, %154 in 1 : vector<24x1xf32>, vector<24x63xf32> -> vector<24x64xf32>
    %156 = vector.broadcast %26 : vector<1x64xf32> to vector<24x64xf32>
    %157 = arith.mulf %155, %156 : vector<24x64xf32>
    %158 = vector.broadcast %152 : vector<24x1xf32> to vector<24x64xf32>
    %159 = arith.mulf %158, %157 : vector<24x64xf32>
    %160 = arith.addf %151, %159 : vector<24x64xf32>
    %161 = vector.extract_strided_slice %2 {offsets = [0, 2], sizes = [24, 1], strides = [1, 1]} : vector<24x9xf32> to vector<24x1xf32>
    %cst_36 = arith.constant 0.000000e+00 : f32
    %162 = vector.broadcast %cst_36 : f32 to vector<24x8xf32>
    %163 = vector.extract_strided_slice %120 {offsets = [0, 0], sizes = [24, 56], strides = [1, 1]} : vector<24x64xf32> to vector<24x56xf32>
    %164 = tpu.concatenate %162, %163 in 1 : vector<24x8xf32>, vector<24x56xf32> -> vector<24x64xf32>
    %165 = vector.broadcast %161 : vector<24x1xf32> to vector<24x64xf32>
    %166 = arith.mulf %165, %164 : vector<24x64xf32>
    %167 = arith.addf %160, %166 : vector<24x64xf32>
    %168 = vector.extract_strided_slice %2 {offsets = [0, 0], sizes = [24, 1], strides = [1, 1]} : vector<24x9xf32> to vector<24x1xf32>
    %cst_37 = arith.constant 0.000000e+00 : f32
    %169 = vector.broadcast %cst_37 : f32 to vector<24x9xf32>
    %170 = vector.extract_strided_slice %120 {offsets = [0, 0], sizes = [24, 55], strides = [1, 1]} : vector<24x64xf32> to vector<24x55xf32>
    %171 = tpu.concatenate %169, %170 in 1 : vector<24x9xf32>, vector<24x55xf32> -> vector<24x64xf32>
    %172 = vector.broadcast %26 : vector<1x64xf32> to vector<24x64xf32>
    %173 = arith.mulf %171, %172 : vector<24x64xf32>
    %174 = vector.broadcast %168 : vector<24x1xf32> to vector<24x64xf32>
    %175 = arith.mulf %174, %173 : vector<24x64xf32>
    %176 = arith.addf %167, %175 : vector<24x64xf32>
    %177 = vector.broadcast %3 : vector<24x1xf32> to vector<24x64xf32>
    %178 = arith.addf %176, %177 : vector<24x64xf32>
    %cst_38 = arith.constant 0.00999999977 : f32
    %179 = vector.broadcast %cst_38 : f32 to vector<24x64xf32>
    %180 = arith.mulf %179, %178 : vector<24x64xf32>
    %181 = arith.maximumf %178, %180 : vector<24x64xf32>
    %182 = tpu.concatenate %181, %110 in 0 : vector<24x64xf32>, vector<4x64xf32> -> vector<28x64xf32>
    %cst_39 = arith.constant dense<0.000000e+00> : vector<8x64xf32>
    %183 = tpu.matmul %4, %182, %cst_39 {dimension_numbers = #tpu.dot_dimension_numbers<[1], [0], [0], [1], [0, 0, 1, 1], [], []>} : vector<8x28xf32>, vector<28x64xf32>, vector<8x64xf32> -> vector<8x64xf32>
    %184 = vector.broadcast %5 : vector<8x1xf32> to vector<8x64xf32>
    %185 = arith.addf %183, %184 : vector<8x64xf32>
    %c1_40 = arith.constant 1 : index
    %c0_41 = arith.constant 0 : index
    %c0_42 = arith.constant 0 : index
    %186 = vector.load %arg8[%c1_40, %c0_41, %c0_42] : memref<2x8x64xf32, #tpu.memory_space<vmem>>, vector<1x8x64xf32>
    %187 = vector.shape_cast %186 : vector<1x8x64xf32> to vector<8x64xf32>
    %188 = vector.shape_cast %185 : vector<8x64xf32> to vector<1x8x64xf32>
    tpu.vector_store %arg8[%c1_40, %c0_41, %c0_42], %188 {strides = array<i32>} : memref<2x8x64xf32, #tpu.memory_space<vmem>>, vector<1x8x64xf32>,
    return
  }
  func.func @transform_0(%arg0: i32) -> (i32, i32, i32) {
    %c0_i32 = arith.constant 0 : i32
    %c0_i32_0 = arith.constant 0 : i32
    %c0_i32_1 = arith.constant 0 : i32
    return %arg0, %c0_i32, %c0_i32_0 : i32, i32, i32
  }
  func.func @transform_1(%arg0: i32) -> (i32, i32) {
    %c0_i32 = arith.constant 0 : i32
    %c0_i32_0 = arith.constant 0 : i32
    %c0_i32_1 = arith.constant 0 : i32
    return %c0_i32, %c0_i32_0 : i32, i32
  }
  func.func @transform_2(%arg0: i32) -> (i32, i32) {
    %c0_i32 = arith.constant 0 : i32
    %c0_i32_0 = arith.constant 0 : i32
    %c0_i32_1 = arith.constant 0 : i32
    return %c0_i32, %c0_i32_0 : i32, i32
  }
  func.func @transform_3(%arg0: i32) -> (i32, i32) {
    %c0_i32 = arith.constant 0 : i32
    %c0_i32_0 = arith.constant 0 : i32
    %c0_i32_1 = arith.constant 0 : i32
    return %c0_i32, %c0_i32_0 : i32, i32
  }
  func.func @transform_4(%arg0: i32) -> (i32, i32) {
    %c0_i32 = arith.constant 0 : i32
    %c0_i32_0 = arith.constant 0 : i32
    %c0_i32_1 = arith.constant 0 : i32
    return %c0_i32, %c0_i32_0 : i32, i32
  }
  func.func @transform_5(%arg0: i32) -> (i32, i32) {
    %c0_i32 = arith.constant 0 : i32
    %c0_i32_0 = arith.constant 0 : i32
    %c0_i32_1 = arith.constant 0 : i32
    return %c0_i32, %c0_i32_0 : i32, i32
  }
  func.func @transform_6(%arg0: i32) -> (i32, i32) {
    %c0_i32 = arith.constant 0 : i32
    %c0_i32_0 = arith.constant 0 : i32
    %c0_i32_1 = arith.constant 0 : i32
    return %c0_i32, %c0_i32_0 : i32, i32
  }
  func.func @transform_7(%arg0: i32) -> (i32, i32, i32) {
    %c0_i32 = arith.constant 0 : i32
    %c0_i32_0 = arith.constant 0 : i32
    %c0_i32_1 = arith.constant 0 : i32
    return %arg0, %c0_i32, %c0_i32_0 : i32, i32, i32
  }
}

</mosaic_0001>

<llo_original>
// kernel: tpu_custom_call.1
$region0: #{tpu_custom_call.1}
  #allocation0 [shape = 'u32[]', space=smem, size = 0x4, offset = 0x4, fixed_abs, tag = 'smem constant byte address 0x4 - core index']
  #allocation1 [shape = 'u32[144,128]{1,0:T(1,128)}', space=vmem, size = 0x12000, scoped, tag = 'internal scratch']
  %s0 = inlined_call_operand.vmem [shape: f32[2,4,256], index: 0, kind: input, shape index: {}]
  %s1 = inlined_call_operand.vmem [shape: f32[24,4], index: 1, kind: input, shape index: {}]
  %s2 = inlined_call_operand.vmem [shape: f32[24,1], index: 2, kind: input, shape index: {}]
  %s3 = inlined_call_operand.vmem [shape: f32[24,9], index: 3, kind: input, shape index: {}]
  %s4 = inlined_call_operand.vmem [shape: f32[24,1], index: 4, kind: input, shape index: {}]
  %s5 = inlined_call_operand.vmem [shape: f32[8,28], index: 5, kind: input, shape index: {}]
  %s6 = inlined_call_operand.vmem [shape: f32[8,1], index: 6, kind: input, shape index: {}]
  %s7 = inlined_call_operand.hbm [shape: f32[2,8,64], index: 7, kind: output, shape index: {}]
  %s8 = sld [smem:[#allocation0]]
  $region38: #{tpu_custom_call.1} parent=0
    _
  %s10 = ssub.s32 1, %s8
  %s11 = scalar_select 0, %s10, %s8
  $region1: #{tpu_custom_call.1} parent=0
    #allocation2 [shape = 'u8[8192]{0}', space=vmem, size = 0x2000, scoped, tag = 'output window, operand 0, single buffered']
    #allocation3 [shape = 's32[1]{0}', space=sflag, size = 0x4, scoped, tag = 'scoped memory for tpu_custom_call.1']
    %12 = vsyncpa [#allocation3], 0
    // Predicated region
    $region2: #{tpu_custom_call.1} parent=1 // pred_check
      _
    $region3: #{tpu_custom_call.1} parent=1 // pred_check_branch
      %14 = sbr.rel (0) target = $region5
    $region4: #{tpu_custom_call.1} parent=1 // pred_region
      _
    $region5: #{tpu_custom_call.1} parent=1 // pred_fallthru
      _
    // Predicated region
    $region6: #{tpu_custom_call.1} parent=1 // pred_check
      _
    $region7: #{tpu_custom_call.1} parent=1 // pred_check_branch
      %16 = sbr.rel (0) target = $region9
    $region8: #{tpu_custom_call.1} parent=1 // pred_region
      _
    $region9: #{tpu_custom_call.1} parent=1 // pred_fallthru
      _
    // Predicated region
    $region10: #{tpu_custom_call.1} parent=1 // pred_check
      _
    $region11: #{tpu_custom_call.1} parent=1 // pred_check_branch
      %18 = sbr.rel (0) target = $region13
    $region12: #{tpu_custom_call.1} parent=1 // pred_region
      _
    $region13: #{tpu_custom_call.1} parent=1 // pred_fallthru
      _
    // Predicated region
    $region14: #{tpu_custom_call.1} parent=1 // pred_check
      _
    $region15: #{tpu_custom_call.1} parent=1 // pred_check_branch
      %20 = sbr.rel (0) target = $region17
    $region16: #{tpu_custom_call.1} parent=1 // pred_region
      _
    $region17: #{tpu_custom_call.1} parent=1 // pred_fallthru
      _
    // Predicated region
    $region18: #{tpu_custom_call.1} parent=1 // pred_check
      _
    $region19: #{tpu_custom_call.1} parent=1 // pred_check_branch
      %22 = sbr.rel (0) target = $region21
    $region20: #{tpu_custom_call.1} parent=1 // pred_region
      _
    $region21: #{tpu_custom_call.1} parent=1 // pred_fallthru
      _
    // Predicated region
    $region22: #{tpu_custom_call.1} parent=1 // pred_check
      _
    $region23: #{tpu_custom_call.1} parent=1 // pred_check_branch
      %24 = sbr.rel (0) target = $region25
    $region24: #{tpu_custom_call.1} parent=1 // pred_region
      _
    $region25: #{tpu_custom_call.1} parent=1 // pred_fallthru
      _
    // Predicated region
    $region26: #{tpu_custom_call.1} parent=1 // pred_check
      _
    $region27: #{tpu_custom_call.1} parent=1 // pred_check_branch
      %26 = sbr.rel (0) target = $region29
    $region28: #{tpu_custom_call.1} parent=1 // pred_region
      _
    $region29: #{tpu_custom_call.1} parent=1 // pred_fallthru
      _
    %v27 = vld [vmem:[%s1] sm:$0xff]
    %v28 = vld [vmem:[%s1 + $0x8] sm:$0xff]
    %v29 = vld [vmem:[%s1 + $0x10] sm:$0xff]
    %v30 = vld [vmem:[%s2] sm:$0xff]
    %v31 = vld [vmem:[%s2 + $0x8] sm:$0xff]
    %v32 = vld [vmem:[%s2 + $0x10] sm:$0xff]
    %v33 = vld [vmem:[%s3] sm:$0xff]
    %v34 = vld [vmem:[%s3 + $0x8] sm:$0xff]
    %v35 = vld [vmem:[%s3 + $0x10] sm:$0xff]
    %v36 = vld [vmem:[%s4] sm:$0xff]
    %v37 = vld [vmem:[%s4 + $0x8] sm:$0xff]
    %v38 = vld [vmem:[%s4 + $0x10] sm:$0xff]
    %v39 = vld [vmem:[%s5] sm:$0xff]
    %v40 = vld [vmem:[%s6] sm:$0xff]
    %v41 = vlaneseq
    %v42 = vand.u32 %v41, 127
    %vm43 = vcmp.lt.s32.totalorder %v42, 0
    %v44 = vsub.s32 0, %v42
    %v45 = vsel %vm43, %v44, %v42
    %v46 = vshrl.u32 %v45, 3
    %v47 = vand.u32 %v45, 7
    %v48 = vsub.s32 0, %v47
    %v49 = vsel %vm43, %v48, %v47
    %vm50 = vcmp.ne.s32.totalorder %v49, 0
    %vm51 = vcmp.lt.s32.totalorder %v49, 0
    %vm52 = vmand %vm51, %vm50
    %v53 = vadd.s32 %v49, 8
    %v54 = vsel %vm52, %v53, %v49
    %vm55 = vcmp.ne.s32.totalorder %v54, 0
    %v56 = vsel %vm55, 1, 0
    %v57 = vcvt.s32.f32 %v56
    %v58 = vld [vmem:[%s0] sm:$0xff]
    %60 = vset.pattern.permute.xlu0 0
    %61 = vperm.xlu0 %60, %v30
    %v62 = vpop.permute.xlu0 %61
    %65 = vset.pattern.permute.xlu0 0
    %66 = vperm.xlu0 %65, %v31
    %v67 = vpop.permute.xlu0 %66
    %70 = vset.pattern.permute.xlu0 0
    %71 = vperm.xlu0 %70, %v32
    %v72 = vpop.permute.xlu0 %71
    %v75 = vcombine.high %v58, %v58
    %vm76 = vcmask 31744
    %v78 = vsel %vm76, %v27, 0
    %v81 = vsel %vm76, %v28, 0
    %v84 = vsel %vm76, %v29, 0
    %vm86 = vcmask 1043456
    %v87 = vsel %vm86, %v58, 0
    %v89 = vsel %vm86, %v75, 0
    %91 = vmatprep.subr.mxu0 %v89
    %92 = vmatpush1.msra.mxu0 %v87
    %93 = vmatprep.subr.mxu0 0.0
    %94 = vmatpush1.msra.mxu0 0.0
    %95 = vmatprep.subr.mxu0 0.0
    %96 = vmatpush1.msra.mxu0 0.0
    %97 = vmatprep.subr.mxu0 0.0
    %98 = vmatpush1.msra.mxu0 0.0
    %99 = vmatprep.subr.mxu0 0.0
    %100 = vmatpush1.msra.mxu0 0.0
    %101 = vmatprep.subr.mxu0 0.0
    %102 = vmatpush1.msra.mxu0 0.0
    %103 = vmatprep.subr.mxu0 0.0
    %104 = vmatpush1.msra.mxu0 0.0
    %105 = vmatprep.subr.mxu0 0.0
    %106 = vmatpush1.msra.mxu0 0.0
    %107 = vmatprep.subr.mxu0 0.0
    %108 = vmatpush1.msra.mxu0 0.0
    %109 = vmatprep.subr.mxu0 0.0
    %110 = vmatpush1.msra.mxu0 0.0
    %111 = vmatprep.subr.mxu0 0.0
    %112 = vmatpush1.msra.mxu0 0.0
    %113 = vmatprep.subr.mxu0 0.0
    %114 = vmatpush1.msra.mxu0 0.0
    %115 = vmatprep.subr.mxu0 0.0
    %116 = vmatpush1.msra.mxu0 0.0
    %117 = vmatprep.subr.mxu0 0.0
    %118 = vmatpush1.msra.mxu0 0.0
    %119 = vmatprep.subr.mxu0 0.0
    %120 = vmatpush1.msra.mxu0 0.0
    %121 = vmatprep.subr.mxu0 0.0
    %122 = vmatpush1.msra.mxu0 0.0
    %123 = vmatprep.subr.mxu0 0.0
    %124 = vmatpush1.msra.mxu0 0.0
    %125 = vmatprep.subr.mxu0 0.0
    %126 = vmatpush1.msra.mxu0 0.0
    %127 = vmatprep.subr.mxu0 0.0
    %128 = vmatpush1.msra.mxu0 0.0
    %129 = vmatprep.subr.mxu0 0.0
    %130 = vmatpush1.msra.mxu0 0.0
    %131 = vmatprep.subr.mxu0 0.0
    %132 = vmatpush1.msra.mxu0 0.0
    %133 = vmatprep.subr.mxu0 0.0
    %134 = vmatpush1.msra.mxu0 0.0
    %135 = vmatprep.subr.mxu0 0.0
    %136 = vmatpush1.msra.mxu0 0.0
    %137 = vmatprep.subr.mxu0 0.0
    %138 = vmatpush1.msra.mxu0 0.0
    %139 = vmatprep.subr.mxu0 0.0
    %140 = vmatpush1.msra.mxu0 0.0
    %141 = vmatprep.subr.mxu0 0.0
    %142 = vmatpush1.msra.mxu0 0.0
    %143 = vmatprep.subr.mxu0 0.0
    %144 = vmatpush1.msra.mxu0 0.0
    %145 = vmatprep.subr.mxu0 0.0
    %146 = vmatpush1.msra.mxu0 0.0
    %147 = vmatprep.subr.mxu0 0.0
    %148 = vmatpush1.msra.mxu0 0.0
    %149 = vmatprep.subr.mxu0 0.0
    %150 = vmatpush1.msra.mxu0 0.0
    %151 = vmatprep.subr.mxu0 0.0
    %152 = vmatpush1.msra.mxu0 0.0
    %153 = vmatprep.subr.mxu0 0.0
    %154 = vmatpush1.msra.mxu0 0.0
    %155 = vmatprep.mubr.f32.mxu0 0.0
    %156 = vmatmul.mubr.f32.gmra.mrb[0].mxu0 %v78
    %v157 = vpop.f32.mrb[0].mxu0
    %v158 = vadd.f32 %v62, %v157
    %v159 = vpop.f32.mrb[0].mxu0
    %v160 = vadd.f32 %v62, %v159
    %161 = vmatprep.mubr.f32.mxu0 0.0
    %162 = vmatmul.mubr.f32.gmra.mrb[0].mxu0 %v81
    %v163 = vpop.f32.mrb[0].mxu0
    %v164 = vadd.f32 %v67, %v163
    %v165 = vpop.f32.mrb[0].mxu0
    %v166 = vadd.f32 %v67, %v165
    %167 = vmatprep.mubr.f32.mxu0 0.0
    %168 = vmatmul.mubr.f32.gmra.mrb[0].mxu0 %v84
    %v169 = vpop.f32.mrb[0].mxu0
    %v170 = vadd.f32 %v72, %v169
    %v171 = vpop.f32.mrb[0].mxu0
    %v172 = vadd.f32 %v72, %v171
    %173 = vdwg.mxu0
    %v174 = vmul.f32 %v158, 0.01
    %v175 = vmul.f32 %v160, 0.01
    %v176 = vmul.f32 %v164, 0.01
    %v177 = vmul.f32 %v166, 0.01
    %v178 = vmul.f32 %v170, 0.01
    %v179 = vmul.f32 %v172, 0.01
    %v180 = vmax.f32 %v158, %v174
    %v181 = vmax.f32 %v160, %v175
    %v182 = vmax.f32 %v164, %v176
    %v183 = vmax.f32 %v166, %v177
    %v184 = vmax.f32 %v170, %v178
    %v185 = vmax.f32 %v172, %v179
    %187 = vset.pattern.permute.xlu0 4
    %188 = vperm.xlu0 %187, %v33
    %v189 = vpop.permute.xlu0 %188
    %192 = vset.pattern.permute.xlu0 4
    %193 = vperm.xlu0 %192, %v34
    %v194 = vpop.permute.xlu0 %193
    %197 = vset.pattern.permute.xlu0 4
    %198 = vperm.xlu0 %197, %v35
    %v199 = vpop.permute.xlu0 %198
    %v201 = vmul.f32 %v189, %v180
    %v202 = vmul.f32 %v194, %v182
    %v203 = vmul.f32 %v199, %v184
    %204 = vset.pattern.permute.xlu0 5
    %205 = vperm.xlu0 %204, %v33
    %v206 = vpop.permute.xlu0 %205
    %208 = vset.pattern.permute.xlu0 5
    %209 = vperm.xlu0 %208, %v34
    %v210 = vpop.permute.xlu0 %209
    %212 = vset.pattern.permute.xlu0 5
    %213 = vperm.xlu0 %212, %v35
    %v214 = vpop.permute.xlu0 %213
    %v216 = vmul.f32 %v206, %v180
    %v217 = vmul.f32 %v210, %v182
    %v218 = vmul.f32 %v214, %v184
    %222 = vrot.lane.b32.xlu0 %v216, 64
    %v223 = vpop.permute.xlu0 %222
    %224 = vrot.lane.b32.xlu0 %v217, 64
    %v225 = vpop.permute.xlu0 %224
    %226 = vrot.lane.b32.xlu0 %v218, 64
    %v227 = vpop.permute.xlu0 %226
    %v231 = vadd.f32 %v201, %v223
    %v232 = vadd.f32 %v202, %v225
    %v233 = vadd.f32 %v203, %v227
    %237 = vrot.lane.b32.xlu0 %v180, 65
    %v238 = vpop.permute.xlu0 %237
    %239 = vrot.lane.b32.xlu0 %v182, 65
    %v240 = vpop.permute.xlu0 %239
    %241 = vrot.lane.b32.xlu0 %v184, 65
    %v242 = vpop.permute.xlu0 %241
    %vm246 = vcmask 7168
    %v247 = vsel %vm246, 0.0, %v238
    %v248 = vsel %vm246, 0.0, %v240
    %v249 = vsel %vm246, 0.0, %v242
    %v250 = vmul.f32 %v247, %v57
    %v251 = vmul.f32 %v248, %v57
    %v252 = vmul.f32 %v249, %v57
    %253 = vset.pattern.permute.xlu0 3
    %254 = vperm.xlu0 %253, %v33
    %v255 = vpop.permute.xlu0 %254
    %257 = vset.pattern.permute.xlu0 3
    %258 = vperm.xlu0 %257, %v34
    %v259 = vpop.permute.xlu0 %258
    %261 = vset.pattern.permute.xlu0 3
    %262 = vperm.xlu0 %261, %v35
    %v263 = vpop.permute.xlu0 %262
    %v265 = vmul.f32 %v255, %v250
    %v266 = vmul.f32 %v259, %v251
    %v267 = vmul.f32 %v263, %v252
    %v268 = vadd.f32 %v231, %v265
    %v269 = vadd.f32 %v232, %v266
    %v270 = vadd.f32 %v233, %v267
    %271 = vset.pattern.permute.xlu0 7
    %272 = vperm.xlu0 %271, %v33
    %v273 = vpop.permute.xlu0 %272
    %275 = vset.pattern.permute.xlu0 7
    %276 = vperm.xlu0 %275, %v34
    %v277 = vpop.permute.xlu0 %276
    %279 = vset.pattern.permute.xlu0 7
    %280 = vperm.xlu0 %279, %v35
    %v281 = vpop.permute.xlu0 %280
    %v283 = vmul.f32 %v273, %v181
    %v284 = vmul.f32 %v277, %v183
    %v285 = vmul.f32 %v281, %v185
    %v286 = vadd.f32 %v268, %v283
    %v287 = vadd.f32 %v269, %v284
    %v288 = vadd.f32 %v270, %v285
    %292 = vrot.lane.b32.xlu0 %v181, 8
    %v293 = vpop.permute.xlu0 %292
    %294 = vrot.lane.b32.xlu0 %v183, 8
    %v295 = vpop.permute.xlu0 %294
    %296 = vrot.lane.b32.xlu0 %v185, 8
    %v297 = vpop.permute.xlu0 %296
    %vm301 = vcmask 64512
    %v302 = vsel %vm301, 0.0, %v293
    %v303 = vsel %vm301, 0.0, %v295
    %v304 = vsel %vm301, 0.0, %v297
    %305 = vset.pattern.permute.xlu0 1
    %306 = vperm.xlu0 %305, %v33
    %v307 = vpop.permute.xlu0 %306
    %309 = vset.pattern.permute.xlu0 1
    %310 = vperm.xlu0 %309, %v34
    %v311 = vpop.permute.xlu0 %310
    %313 = vset.pattern.permute.xlu0 1
    %314 = vperm.xlu0 %313, %v35
    %v315 = vpop.permute.xlu0 %314
    %v317 = vmul.f32 %v307, %v302
    %v318 = vmul.f32 %v311, %v303
    %v319 = vmul.f32 %v315, %v304
    %v320 = vadd.f32 %v286, %v317
    %v321 = vadd.f32 %v287, %v318
    %v322 = vadd.f32 %v288, %v319
    %323 = vset.pattern.permute.xlu0 8
    %324 = vperm.xlu0 %323, %v33
    %v325 = vpop.permute.xlu0 %324
    %327 = vset.pattern.permute.xlu0 8
    %328 = vperm.xlu0 %327, %v34
    %v329 = vpop.permute.xlu0 %328
    %331 = vset.pattern.permute.xlu0 8
    %332 = vperm.xlu0 %331, %v35
    %v333 = vpop.permute.xlu0 %332
    %v335 = vmul.f32 %v325, %v181
    %v336 = vmul.f32 %v329, %v183
    %v337 = vmul.f32 %v333, %v185
    %341 = vrot.lane.b32.xlu0 %v335, 64
    %v342 = vpop.permute.xlu0 %341
    %343 = vrot.lane.b32.xlu0 %v336, 64
    %v344 = vpop.permute.xlu0 %343
    %345 = vrot.lane.b32.xlu0 %v337, 64
    %v346 = vpop.permute.xlu0 %345
    %v350 = vadd.f32 %v320, %v342
    %v351 = vadd.f32 %v321, %v344
    %v352 = vadd.f32 %v322, %v346
    %353 = vrot.lane.b32.xlu0 %v181, 65
    %v354 = vpop.permute.xlu0 %353
    %355 = vrot.lane.b32.xlu0 %v183, 65
    %v356 = vpop.permute.xlu0 %355
    %357 = vrot.lane.b32.xlu0 %v185, 65
    %v358 = vpop.permute.xlu0 %357
    %v362 = vsel %vm246, 0.0, %v354
    %v363 = vsel %vm246, 0.0, %v356
    %v364 = vsel %vm246, 0.0, %v358
    %v365 = vmul.f32 %v362, %v57
    %v366 = vmul.f32 %v363, %v57
    %v367 = vmul.f32 %v364, %v57
    %368 = vset.pattern.permute.xlu0 6
    %369 = vperm.xlu0 %368, %v33
    %v370 = vpop.permute.xlu0 %369
    %372 = vset.pattern.permute.xlu0 6
    %373 = vperm.xlu0 %372, %v34
    %v374 = vpop.permute.xlu0 %373
    %376 = vset.pattern.permute.xlu0 6
    %377 = vperm.xlu0 %376, %v35
    %v378 = vpop.permute.xlu0 %377
    %v380 = vmul.f32 %v370, %v365
    %v381 = vmul.f32 %v374, %v366
    %v382 = vmul.f32 %v378, %v367
    %v383 = vadd.f32 %v350, %v380
    %v384 = vadd.f32 %v351, %v381
    %v385 = vadd.f32 %v352, %v382
    %386 = vrot.lane.b32.xlu0 %v181, 72
    %v387 = vpop.permute.xlu0 %386
    %388 = vrot.lane.b32.xlu0 %v183, 72
    %v389 = vpop.permute.xlu0 %388
    %390 = vrot.lane.b32.xlu0 %v185, 72
    %v391 = vpop.permute.xlu0 %390
    %v395 = vsel %vm301, 0.0, %v387
    %v396 = vsel %vm301, 0.0, %v389
    %v397 = vsel %vm301, 0.0, %v391
    %398 = vset.pattern.permute.xlu0 2
    %399 = vperm.xlu0 %398, %v33
    %v400 = vpop.permute.xlu0 %399
    %402 = vset.pattern.permute.xlu0 2
    %403 = vperm.xlu0 %402, %v34
    %v404 = vpop.permute.xlu0 %403
    %406 = vset.pattern.permute.xlu0 2
    %407 = vperm.xlu0 %406, %v35
    %v408 = vpop.permute.xlu0 %407
    %v410 = vmul.f32 %v400, %v395
    %v411 = vmul.f32 %v404, %v396
    %v412 = vmul.f32 %v408, %v397
    %v413 = vadd.f32 %v383, %v410
    %v414 = vadd.f32 %v384, %v411
    %v415 = vadd.f32 %v385, %v412
    %416 = vrot.lane.b32.xlu0 %v181, 73
    %v417 = vpop.permute.xlu0 %416
    %418 = vrot.lane.b32.xlu0 %v183, 73
    %v419 = vpop.permute.xlu0 %418
    %420 = vrot.lane.b32.xlu0 %v185, 73
    %v421 = vpop.permute.xlu0 %420
    %vm425 = vcmask 72704
    %v426 = vsel %vm425, 0.0, %v417
    %v427 = vsel %vm425, 0.0, %v419
    %v428 = vsel %vm425, 0.0, %v421
    %v429 = vmul.f32 %v426, %v57
    %v430 = vmul.f32 %v427, %v57
    %v431 = vmul.f32 %v428, %v57
    %432 = vset.pattern.permute.xlu0 0
    %433 = vperm.xlu0 %432, %v33
    %v434 = vpop.permute.xlu0 %433
    %436 = vset.pattern.permute.xlu0 0
    %437 = vperm.xlu0 %436, %v34
    %v438 = vpop.permute.xlu0 %437
    %440 = vset.pattern.permute.xlu0 0
    %441 = vperm.xlu0 %440, %v35
    %v442 = vpop.permute.xlu0 %441
    %v444 = vmul.f32 %v434, %v429
    %v445 = vmul.f32 %v438, %v430
    %v446 = vmul.f32 %v442, %v431
    %v447 = vadd.f32 %v413, %v444
    %v448 = vadd.f32 %v414, %v445
    %v449 = vadd.f32 %v415, %v446
    %451 = vset.pattern.permute.xlu0 0
    %452 = vperm.xlu0 %451, %v36
    %v453 = vpop.permute.xlu0 %452
    %456 = vset.pattern.permute.xlu0 0
    %457 = vperm.xlu0 %456, %v37
    %v458 = vpop.permute.xlu0 %457
    %461 = vset.pattern.permute.xlu0 0
    %462 = vperm.xlu0 %461, %v38
    %v463 = vpop.permute.xlu0 %462
    %v465 = vadd.f32 %v447, %v453
    %v466 = vadd.f32 %v448, %v458
    %v467 = vadd.f32 %v449, %v463
    %v468 = vmul.f32 %v465, 0.01
    %v469 = vmul.f32 %v466, 0.01
    %v470 = vmul.f32 %v467, 0.01
    %v471 = vmax.f32 %v465, %v468
    %v472 = vmax.f32 %v466, %v469
    %v473 = vmax.f32 %v467, %v470
    %475 = vset.pattern.permute.xlu0 0
    %476 = vperm.xlu0 %475, %v40
    %v477 = vpop.permute.xlu0 %476
    %vm479 = vcmask 228352
    %v481 = vsel %vm479, %v39, 0
    %483 = vmatprep.subr.mxu0 0.0
    %484 = vmatpush1.msra.mxu0 %v471
    %485 = vmatprep.subr.mxu0 0.0
    %486 = vmatpush1.msra.mxu0 %v472
    %487 = vmatprep.subr.mxu0 0.0
    %488 = vmatpush1.msra.mxu0 %v473
    %489 = vmatprep.subr.mxu0 0.0
    %490 = vmatpush1.msra.mxu0 %v87
    %491 = vmatprep.subr.mxu0 0.0
    %492 = vmatpush1.msra.mxu0 0.0
    %493 = vmatprep.subr.mxu0 0.0
    %494 = vmatpush1.msra.mxu0 0.0
    %495 = vmatprep.subr.mxu0 0.0
    %496 = vmatpush1.msra.mxu0 0.0
    %497 = vmatprep.subr.mxu0 0.0
    %498 = vmatpush1.msra.mxu0 0.0
    %499 = vmatprep.subr.mxu0 0.0
    %500 = vmatpush1.msra.mxu0 0.0
    %501 = vmatprep.subr.mxu0 0.0
    %502 = vmatpush1.msra.mxu0 0.0
    %503 = vmatprep.subr.mxu0 0.0
    %504 = vmatpush1.msra.mxu0 0.0
    %505 = vmatprep.subr.mxu0 0.0
    %506 = vmatpush1.msra.mxu0 0.0
    %507 = vmatprep.subr.mxu0 0.0
    %508 = vmatpush1.msra.mxu0 0.0
    %509 = vmatprep.subr.mxu0 0.0
    %510 = vmatpush1.msra.mxu0 0.0
    %511 = vmatprep.subr.mxu0 0.0
    %512 = vmatpush1.msra.mxu0 0.0
    %513 = vmatprep.subr.mxu0 0.0
    %514 = vmatpush1.msra.mxu0 0.0
    %515 = vmatprep.subr.mxu0 0.0
    %516 = vmatpush1.msra.mxu0 0.0
    %517 = vmatprep.subr.mxu0 0.0
    %518 = vmatpush1.msra.mxu0 0.0
    %519 = vmatprep.subr.mxu0 0.0
    %520 = vmatpush1.msra.mxu0 0.0
    %521 = vmatprep.subr.mxu0 0.0
    %522 = vmatpush1.msra.mxu0 0.0
    %523 = vmatprep.subr.mxu0 0.0
    %524 = vmatpush1.msra.mxu0 0.0
    %525 = vmatprep.subr.mxu0 0.0
    %526 = vmatpush1.msra.mxu0 0.0
    %527 = vmatprep.subr.mxu0 0.0
    %528 = vmatpush1.msra.mxu0 0.0
    %529 = vmatprep.subr.mxu0 0.0
    %530 = vmatpush1.msra.mxu0 0.0
    %531 = vmatprep.subr.mxu0 0.0
    %532 = vmatpush1.msra.mxu0 0.0
    %533 = vmatprep.subr.mxu0 0.0
    %534 = vmatpush1.msra.mxu0 0.0
    %535 = vmatprep.subr.mxu0 0.0
    %536 = vmatpush1.msra.mxu0 0.0
    %537 = vmatprep.subr.mxu0 0.0
    %538 = vmatpush1.msra.mxu0 0.0
    %539 = vmatprep.subr.mxu0 0.0
    %540 = vmatpush1.msra.mxu0 0.0
    %541 = vmatprep.subr.mxu0 0.0
    %542 = vmatpush1.msra.mxu0 0.0
    %543 = vmatprep.subr.mxu0 0.0
    %544 = vmatpush1.msra.mxu0 0.0
    %545 = vmatprep.subr.mxu0 0.0
    %546 = vmatpush1.msra.mxu0 0.0
    %547 = vmatprep.mubr.f32.mxu0 0.0
    %548 = vmatmul.mubr.f32.gmra.mrb[0].mxu0 %v481
    %v549 = vpop.f32.mrb[0].mxu0
    %v550 = vadd.f32 %v477, %v549
    %v551 = vpop.f32.mrb[0].mxu0
    %552 = vdwg.mxu0
    %vm553 = vcmask 523264
    %554 = vst.msk [vmem:[#allocation2] sm:$0xff] %vm553, %v550
    %s555 = scalar_lea.vmem %s0, 8
    %v556 = vld [vmem:[%s555] sm:$0xff]
    %v558 = vcombine.high %v556, %v556
    %v559 = vsel %vm86, %v556, 0
    %v561 = vsel %vm86, %v558, 0
    %563 = vmatprep.subr.mxu0 %v561
    %564 = vmatpush1.msra.mxu0 %v559
    %565 = vmatprep.subr.mxu0 0.0
    %566 = vmatpush1.msra.mxu0 0.0
    %567 = vmatprep.subr.mxu0 0.0
    %568 = vmatpush1.msra.mxu0 0.0
    %569 = vmatprep.subr.mxu0 0.0
    %570 = vmatpush1.msra.mxu0 0.0
    %571 = vmatprep.subr.mxu0 0.0
    %572 = vmatpush1.msra.mxu0 0.0
    %573 = vmatprep.subr.mxu0 0.0
    %574 = vmatpush1.msra.mxu0 0.0
    %575 = vmatprep.subr.mxu0 0.0
    %576 = vmatpush1.msra.mxu0 0.0
    %577 = vmatprep.subr.mxu0 0.0
    %578 = vmatpush1.msra.mxu0 0.0
    %579 = vmatprep.subr.mxu0 0.0
    %580 = vmatpush1.msra.mxu0 0.0
    %581 = vmatprep.subr.mxu0 0.0
    %582 = vmatpush1.msra.mxu0 0.0
    %583 = vmatprep.subr.mxu0 0.0
    %584 = vmatpush1.msra.mxu0 0.0
    %585 = vmatprep.subr.mxu0 0.0
    %586 = vmatpush1.msra.mxu0 0.0
    %587 = vmatprep.subr.mxu0 0.0
    %588 = vmatpush1.msra.mxu0 0.0
    %589 = vmatprep.subr.mxu0 0.0
    %590 = vmatpush1.msra.mxu0 0.0
    %591 = vmatprep.subr.mxu0 0.0
    %592 = vmatpush1.msra.mxu0 0.0
    %593 = vmatprep.subr.mxu0 0.0
    %594 = vmatpush1.msra.mxu0 0.0
    %595 = vmatprep.subr.mxu0 0.0
    %596 = vmatpush1.msra.mxu0 0.0
    %597 = vmatprep.subr.mxu0 0.0
    %598 = vmatpush1.msra.mxu0 0.0
    %599 = vmatprep.subr.mxu0 0.0
    %600 = vmatpush1.msra.mxu0 0.0
    %601 = vmatprep.subr.mxu0 0.0
    %602 = vmatpush1.msra.mxu0 0.0
    %603 = vmatprep.subr.mxu0 0.0
    %604 = vmatpush1.msra.mxu0 0.0
    %605 = vmatprep.subr.mxu0 0.0
    %606 = vmatpush1.msra.mxu0 0.0
    %607 = vmatprep.subr.mxu0 0.0
    %608 = vmatpush1.msra.mxu0 0.0
    %609 = vmatprep.subr.mxu0 0.0
    %610 = vmatpush1.msra.mxu0 0.0
    %611 = vmatprep.subr.mxu0 0.0
    %612 = vmatpush1.msra.mxu0 0.0
    %613 = vmatprep.subr.mxu0 0.0
    %614 = vmatpush1.msra.mxu0 0.0
    %615 = vmatprep.subr.mxu0 0.0
    %616 = vmatpush1.msra.mxu0 0.0
    %617 = vmatprep.subr.mxu0 0.0
    %618 = vmatpush1.msra.mxu0 0.0
    %619 = vmatprep.subr.mxu0 0.0
    %620 = vmatpush1.msra.mxu0 0.0
    %621 = vmatprep.subr.mxu0 0.0
    %622 = vmatpush1.msra.mxu0 0.0
    %623 = vmatprep.subr.mxu0 0.0
    %624 = vmatpush1.msra.mxu0 0.0
    %625 = vmatprep.subr.mxu0 0.0
    %626 = vmatpush1.msra.mxu0 0.0
    %627 = vmatprep.mubr.f32.mxu0 0.0
    %628 = vmatmul.mubr.f32.gmra.mrb[0].mxu0 %v78
    %v629 = vpop.f32.mrb[0].mxu0
    %v630 = vadd.f32 %v62, %v629
    %v631 = vpop.f32.mrb[0].mxu0
    %v632 = vadd.f32 %v62, %v631
    %633 = vmatprep.mubr.f32.mxu0 0.0
    %634 = vmatmul.mubr.f32.gmra.mrb[0].mxu0 %v81
    %v635 = vpop.f32.mrb[0].mxu0
    %v636 = vadd.f32 %v67, %v635
    %v637 = vpop.f32.mrb[0].mxu0
    %v638 = vadd.f32 %v67, %v637
    %639 = vmatprep.mubr.f32.mxu0 0.0
    %640 = vmatmul.mubr.f32.gmra.mrb[0].mxu0 %v84
    %v641 = vpop.f32.mrb[0].mxu0
    %v642 = vadd.f32 %v72, %v641
    %v643 = vpop.f32.mrb[0].mxu0
    %v644 = vadd.f32 %v72, %v643
    %645 = vdwg.mxu0
    %v646 = vmul.f32 %v630, 0.01
    %v647 = vmul.f32 %v632, 0.01
    %v648 = vmul.f32 %v636, 0.01
    %v649 = vmul.f32 %v638, 0.01
    %v650 = vmul.f32 %v642, 0.01
    %v651 = vmul.f32 %v644, 0.01
    %v652 = vmax.f32 %v630, %v646
    %v653 = vmax.f32 %v632, %v647
    %v654 = vmax.f32 %v636, %v648
    %v655 = vmax.f32 %v638, %v649
    %v656 = vmax.f32 %v642, %v650
    %v657 = vmax.f32 %v644, %v651
    %v658 = vmul.f32 %v189, %v652
    %v659 = vmul.f32 %v194, %v654
    %v660 = vmul.f32 %v199, %v656
    %v661 = vmul.f32 %v206, %v652
    %v662 = vmul.f32 %v210, %v654
    %v663 = vmul.f32 %v214, %v656
    %667 = vrot.lane.b32.xlu0 %v661, 64
    %v668 = vpop.permute.xlu0 %667
    %669 = vrot.lane.b32.xlu0 %v662, 64
    %v670 = vpop.permute.xlu0 %669
    %671 = vrot.lane.b32.xlu0 %v663, 64
    %v672 = vpop.permute.xlu0 %671
    %v676 = vadd.f32 %v658, %v668
    %v677 = vadd.f32 %v659, %v670
    %v678 = vadd.f32 %v660, %v672
    %682 = vrot.lane.b32.xlu0 %v652, 65
    %v683 = vpop.permute.xlu0 %682
    %684 = vrot.lane.b32.xlu0 %v654, 65
    %v685 = vpop.permute.xlu0 %684
    %686 = vrot.lane.b32.xlu0 %v656, 65
    %v687 = vpop.permute.xlu0 %686
    %v691 = vsel %vm246, 0.0, %v683
    %v692 = vsel %vm246, 0.0, %v685
    %v693 = vsel %vm246, 0.0, %v687
    %v694 = vmul.f32 %v691, %v57
    %v695 = vmul.f32 %v692, %v57
    %v696 = vmul.f32 %v693, %v57
    %v697 = vmul.f32 %v255, %v694
    %v698 = vmul.f32 %v259, %v695
    %v699 = vmul.f32 %v263, %v696
    %v700 = vadd.f32 %v676, %v697
    %v701 = vadd.f32 %v677, %v698
    %v702 = vadd.f32 %v678, %v699
    %v703 = vmul.f32 %v273, %v653
    %v704 = vmul.f32 %v277, %v655
    %v705 = vmul.f32 %v281, %v657
    %v706 = vadd.f32 %v700, %v703
    %v707 = vadd.f32 %v701, %v704
    %v708 = vadd.f32 %v702, %v705
    %712 = vrot.lane.b32.xlu0 %v653, 8
    %v713 = vpop.permute.xlu0 %712
    %714 = vrot.lane.b32.xlu0 %v655, 8
    %v715 = vpop.permute.xlu0 %714
    %716 = vrot.lane.b32.xlu0 %v657, 8
    %v717 = vpop.permute.xlu0 %716
    %v721 = vsel %vm301, 0.0, %v713
    %v722 = vsel %vm301, 0.0, %v715
    %v723 = vsel %vm301, 0.0, %v717
    %v724 = vmul.f32 %v307, %v721
    %v725 = vmul.f32 %v311, %v722
    %v726 = vmul.f32 %v315, %v723
    %v727 = vadd.f32 %v706, %v724
    %v728 = vadd.f32 %v707, %v725
    %v729 = vadd.f32 %v708, %v726
    %v730 = vmul.f32 %v325, %v653
    %v731 = vmul.f32 %v329, %v655
    %v732 = vmul.f32 %v333, %v657
    %736 = vrot.lane.b32.xlu0 %v730, 64
    %v737 = vpop.permute.xlu0 %736
    %738 = vrot.lane.b32.xlu0 %v731, 64
    %v739 = vpop.permute.xlu0 %738
    %740 = vrot.lane.b32.xlu0 %v732, 64
    %v741 = vpop.permute.xlu0 %740
    %v745 = vadd.f32 %v727, %v737
    %v746 = vadd.f32 %v728, %v739
    %v747 = vadd.f32 %v729, %v741
    %748 = vrot.lane.b32.xlu0 %v653, 65
    %v749 = vpop.permute.xlu0 %748
    %750 = vrot.lane.b32.xlu0 %v655, 65
    %v751 = vpop.permute.xlu0 %750
    %752 = vrot.lane.b32.xlu0 %v657, 65
    %v753 = vpop.permute.xlu0 %752
    %v757 = vsel %vm246, 0.0, %v749
    %v758 = vsel %vm246, 0.0, %v751
    %v759 = vsel %vm246, 0.0, %v753
    %v760 = vmul.f32 %v757, %v57
    %v761 = vmul.f32 %v758, %v57
    %v762 = vmul.f32 %v759, %v57
    %v763 = vmul.f32 %v370, %v760
    %v764 = vmul.f32 %v374, %v761
    %v765 = vmul.f32 %v378, %v762
    %v766 = vadd.f32 %v745, %v763
    %v767 = vadd.f32 %v746, %v764
    %v768 = vadd.f32 %v747, %v765
    %769 = vrot.lane.b32.xlu0 %v653, 72
    %v770 = vpop.permute.xlu0 %769
    %771 = vrot.lane.b32.xlu0 %v655, 72
    %v772 = vpop.permute.xlu0 %771
    %773 = vrot.lane.b32.xlu0 %v657, 72
    %v774 = vpop.permute.xlu0 %773
    %v778 = vsel %vm301, 0.0, %v770
    %v779 = vsel %vm301, 0.0, %v772
    %v780 = vsel %vm301, 0.0, %v774
    %v781 = vmul.f32 %v400, %v778
    %v782 = vmul.f32 %v404, %v779
    %v783 = vmul.f32 %v408, %v780
    %v784 = vadd.f32 %v766, %v781
    %v785 = vadd.f32 %v767, %v782
    %v786 = vadd.f32 %v768, %v783
    %787 = vrot.lane.b32.xlu0 %v653, 73
    %v788 = vpop.permute.xlu0 %787
    %789 = vrot.lane.b32.xlu0 %v655, 73
    %v790 = vpop.permute.xlu0 %789
    %791 = vrot.lane.b32.xlu0 %v657, 73
    %v792 = vpop.permute.xlu0 %791
    %v796 = vsel %vm425, 0.0, %v788
    %v797 = vsel %vm425, 0.0, %v790
    %v798 = vsel %vm425, 0.0, %v792
    %v799 = vmul.f32 %v796, %v57
    %v800 = vmul.f32 %v797, %v57
    %v801 = vmul.f32 %v798, %v57
    %v802 = vmul.f32 %v434, %v799
    %v803 = vmul.f32 %v438, %v800
    %v804 = vmul.f32 %v442, %v801
    %v805 = vadd.f32 %v784, %v802
    %v806 = vadd.f32 %v785, %v803
    %v807 = vadd.f32 %v786, %v804
    %v808 = vadd.f32 %v805, %v453
    %v809 = vadd.f32 %v806, %v458
    %v810 = vadd.f32 %v807, %v463
    %v811 = vmul.f32 %v808, 0.01
    %v812 = vmul.f32 %v809, 0.01
    %v813 = vmul.f32 %v810, 0.01
    %v814 = vmax.f32 %v808, %v811
    %v815 = vmax.f32 %v809, %v812
    %v816 = vmax.f32 %v810, %v813
    %817 = vmatprep.subr.mxu0 0.0
    %818 = vmatpush1.msra.mxu0 %v814
    %819 = vmatprep.subr.mxu0 0.0
    %820 = vmatpush1.msra.mxu0 %v815
    %821 = vmatprep.subr.mxu0 0.0
    %822 = vmatpush1.msra.mxu0 %v816
    %823 = vmatprep.subr.mxu0 0.0
    %824 = vmatpush1.msra.mxu0 %v559
    %825 = vmatprep.subr.mxu0 0.0
    %826 = vmatpush1.msra.mxu0 0.0
    %827 = vmatprep.subr.mxu0 0.0
    %828 = vmatpush1.msra.mxu0 0.0
    %829 = vmatprep.subr.mxu0 0.0
    %830 = vmatpush1.msra.mxu0 0.0
    %831 = vmatprep.subr.mxu0 0.0
    %832 = vmatpush1.msra.mxu0 0.0
    %833 = vmatprep.subr.mxu0 0.0
    %834 = vmatpush1.msra.mxu0 0.0
    %835 = vmatprep.subr.mxu0 0.0
    %836 = vmatpush1.msra.mxu0 0.0
    %837 = vmatprep.subr.mxu0 0.0
    %838 = vmatpush1.msra.mxu0 0.0
    %839 = vmatprep.subr.mxu0 0.0
    %840 = vmatpush1.msra.mxu0 0.0
    %841 = vmatprep.subr.mxu0 0.0
    %842 = vmatpush1.msra.mxu0 0.0
    %843 = vmatprep.subr.mxu0 0.0
    %844 = vmatpush1.msra.mxu0 0.0
    %845 = vmatprep.subr.mxu0 0.0
    %846 = vmatpush1.msra.mxu0 0.0
    %847 = vmatprep.subr.mxu0 0.0
    %848 = vmatpush1.msra.mxu0 0.0
    %849 = vmatprep.subr.mxu0 0.0
    %850 = vmatpush1.msra.mxu0 0.0
    %851 = vmatprep.subr.mxu0 0.0
    %852 = vmatpush1.msra.mxu0 0.0
    %853 = vmatprep.subr.mxu0 0.0
    %854 = vmatpush1.msra.mxu0 0.0
    %855 = vmatprep.subr.mxu0 0.0
    %856 = vmatpush1.msra.mxu0 0.0
    %857 = vmatprep.subr.mxu0 0.0
    %858 = vmatpush1.msra.mxu0 0.0
    %859 = vmatprep.subr.mxu0 0.0
    %860 = vmatpush1.msra.mxu0 0.0
    %861 = vmatprep.subr.mxu0 0.0
    %862 = vmatpush1.msra.mxu0 0.0
    %863 = vmatprep.subr.mxu0 0.0
    %864 = vmatpush1.msra.mxu0 0.0
    %865 = vmatprep.subr.mxu0 0.0
    %866 = vmatpush1.msra.mxu0 0.0
    %867 = vmatprep.subr.mxu0 0.0
    %868 = vmatpush1.msra.mxu0 0.0
    %869 = vmatprep.subr.mxu0 0.0
    %870 = vmatpush1.msra.mxu0 0.0
    %871 = vmatprep.subr.mxu0 0.0
    %872 = vmatpush1.msra.mxu0 0.0
    %873 = vmatprep.subr.mxu0 0.0
    %874 = vmatpush1.msra.mxu0 0.0
    %875 = vmatprep.subr.mxu0 0.0
    %876 = vmatpush1.msra.mxu0 0.0
    %877 = vmatprep.subr.mxu0 0.0
    %878 = vmatpush1.msra.mxu0 0.0
    %879 = vmatprep.subr.mxu0 0.0
    %880 = vmatpush1.msra.mxu0 0.0
    %881 = vmatprep.mubr.f32.mxu0 0.0
    %882 = vmatmul.mubr.f32.gmra.mrb[0].mxu0 %v481
    %v883 = vpop.f32.mrb[0].mxu0
    %v884 = vadd.f32 %v477, %v883
    %v885 = vpop.f32.mrb[0].mxu0
    %886 = vdwg.mxu0
    %s887 = scalar_lea.vmem [#allocation2], 8
    %888 = vst.msk [vmem:[%s887] sm:$0xff] %vm553, %v884
    // Predicated region
    $region30: #{tpu_custom_call.1} parent=1 // pred_check
      _
    $region31: #{tpu_custom_call.1} parent=1 // pred_check_branch
      %890 = sbr.rel (0) target = $region33
    $region32: #{tpu_custom_call.1} parent=1 // pred_region
      %s892 = ssub.s32 256, 256
      %893 = vsyncadd [#allocation3], %s892
      %s894 = sshll.u32 [#allocation2], 4
      %s895 = int_to_ptr.vmem [resolvable:$true] %s894
      %900 = dma.vmem_to_hbm [thread:$0]  %s895, 256, %s7, [#allocation3], 128, 128, 8
    $region33: #{tpu_custom_call.1} parent=1 // pred_fallthru
      _
    // Predicated region
    $region34: #{tpu_custom_call.1} parent=1 // pred_check
      _
    $region35: #{tpu_custom_call.1} parent=1 // pred_check_branch
      %902 = sbr.rel (0) target = $region37
    $region36: #{tpu_custom_call.1} parent=1 // pred_region
      %903 = dma.done [#allocation3], 256
    $region37: #{tpu_custom_call.1} parent=1 // pred_fallthru
      _
    %904 = vsyncpa [#allocation3], 1

</llo_original>
